<compile_context>
chip_gen: v7x
topology: tpu7x:2x2x1
jax: 0.10.0
libtpu: 0.0.40
codegen_flags: <defaults>
</compile_context>

<pallas_src>
import jax
import jax.numpy as jnp
from jax.experimental import pallas as pl
from jax.experimental.pallas import tpu as pltpu


def _fused_triplet_kernel(
    img_x_ref, txt_x_ref,
    w1i_ref, b1i_ref, w2i_ref, b2i_ref,     # image-net params
    w1t_ref, b1t_ref, w2t_ref, b2t_ref,     # text-net params
    img_o_ref, txt_o_ref,
):
    """Both embedding MLPs in one kernel body.

    img_x: (3B, IMG_DIM) -> img_o: (3B, E)
    txt_x: (3B, TXT_DIM) -> txt_o: (3B, E)
    o = relu(x @ W1 + b1) @ W2 + b2, fp32 accumulation end-to-end.
    """
    # ---- image net ----
    hi = jnp.dot(img_x_ref[...], w1i_ref[...],
                 preferred_element_type=jnp.float32)
    hi = jnp.maximum(hi + b1i_ref[...], 0.0)          # ReLU on the VPU
    oi = jnp.dot(hi, w2i_ref[...],                    # keep fp32 accumulator
                 preferred_element_type=jnp.float32) + b2i_ref[...]
    img_o_ref[...] = oi.astype(img_o_ref.dtype)

    # ---- text net ----
    ht = jnp.dot(txt_x_ref[...], w1t_ref[...],
                 preferred_element_type=jnp.float32)
    ht = jnp.maximum(ht + b1t_ref[...], 0.0)
    ot = jnp.dot(ht, w2t_ref[...],
                 preferred_element_type=jnp.float32) + b2t_ref[...]
    txt_o_ref[...] = ot.astype(txt_o_ref.dtype)


def _fused_triplet_call(img_x, txt_x, img_params, txt_params):
    """One pallas_call, no grid: everything whole-array resident in VMEM."""
    nb = img_x.shape[0]
    e_img = img_params[2].shape[1]
    e_txt = txt_params[2].shape[1]

    vmem = pl.BlockSpec(memory_space=pltpu.MemorySpace.VMEM)
    n_inputs = 2 + len(img_params) + len(txt_params)

    return pl.pallas_call(
        _fused_triplet_kernel,
        out_shape=(
            jax.ShapeDtypeStruct((nb, e_img), img_x.dtype),
            jax.ShapeDtypeStruct((nb, e_txt), txt_x.dtype),
        ),
        in_specs=[vmem] * n_inputs,
        out_specs=(vmem, vmem),
    )(img_x, txt_x, *img_params, *txt_params)


def init_mlp_params(key, in_dim, hidden_dim, out_dim, dtype=jnp.float32):
    k1, k2 = jax.random.split(key)
    w1 = (jax.random.normal(k1, (in_dim, hidden_dim), dtype) /
          jnp.sqrt(jnp.asarray(in_dim, dtype)))
    b1 = jnp.zeros((1, hidden_dim), dtype)
    w2 = (jax.random.normal(k2, (hidden_dim, out_dim), dtype) /
          jnp.sqrt(jnp.asarray(hidden_dim, dtype)))
    b2 = jnp.zeros((1, out_dim), dtype)
    return (w1, b1, w2, b2)


def inter_triplet_net_forward(params, a_v, p_t, n_t, a_t, p_v, n_v):
    """Mirrors InterTripletNet.forward:
        output_av = image_net(a_v); output_pt = text_net(p_t);
        output_nt = text_net(n_t);  output_at = text_net(a_t);
        output_pv = image_net(p_v); output_nv = image_net(n_v)
    """
    b = a_v.shape[0]
    # Batch-collapse: 3 branches -> one (3B, D) slab per net (no jnp.stack).
    img_x = jnp.concatenate([a_v, p_v, n_v], axis=0)   # (3B, IMG_DIM)
    txt_x = jnp.concatenate([p_t, n_t, a_t], axis=0)   # (3B, TXT_DIM)

    img_out, txt_out = _fused_triplet_call(
        img_x, txt_x, params["image"], params["text"])

    output_av, output_pv, output_nv = (img_out[:b], img_out[b:2 * b],
                                       img_out[2 * b:])
    output_pt, output_nt, output_at = (txt_out[:b], txt_out[b:2 * b],
                                       txt_out[2 * b:])
    return (output_av, output_pt, output_nt, output_at, output_pv, output_nv)


if __name__ == "__main__":
    B = 8           # batch
    IMG_DIM = 256   # image feature dim
    TXT_DIM = 64    # text feature dim
    HIDDEN = 128
    EMBED = 128

    key = jax.random.PRNGKey(0)
    k_img, k_txt, k_in = jax.random.split(key, 3)

    params = {
        "image": init_mlp_params(k_img, IMG_DIM, HIDDEN, EMBED),
        "text": init_mlp_params(k_txt, TXT_DIM, HIDDEN, EMBED),
    }

    ks = jax.random.split(k_in, 6)
    a_v = jax.random.normal(ks[0], (B, IMG_DIM), jnp.float32)
    p_v = jax.random.normal(ks[1], (B, IMG_DIM), jnp.float32)
    n_v = jax.random.normal(ks[2], (B, IMG_DIM), jnp.float32)
    p_t = jax.random.normal(ks[3], (B, TXT_DIM), jnp.float32)
    n_t = jax.random.normal(ks[4], (B, TXT_DIM), jnp.float32)
    a_t = jax.random.normal(ks[5], (B, TXT_DIM), jnp.float32)

    fwd = jax.jit(inter_triplet_net_forward)
    outs = fwd(params, a_v, p_t, n_t, a_t, p_v, n_v)
    outs = jax.block_until_ready(outs)

    # Cross-check against a pure-JAX reference of the same MLPs.
    def ref_mlp(x, w1, b1, w2, b2):
        return jnp.maximum(x @ w1 + b1, 0.0) @ w2 + b2

    ref = (
        ref_mlp(a_v, *params["image"]),
        ref_mlp(p_t, *params["text"]),
        ref_mlp(n_t, *params["text"]),
        ref_mlp(a_t, *params["text"]),
        ref_mlp(p_v, *params["image"]),
        ref_mlp(n_v, *params["image"]),
    )
    for o, r in zip(outs, ref):
        assert o.shape == (B, EMBED)
        assert jnp.allclose(o, r, atol=1e-4, rtol=1e-4)

    print("KERNEL_OK")
</pallas_src>

<mosaic_0001>
module attributes {stable_mosaic.version = 11 : i64} {
  func.func @_fused_triplet_kernel(%arg0: memref<24x256xf32, #tpu.memory_space<vmem>>, %arg1: memref<24x64xf32, #tpu.memory_space<vmem>>, %arg2: memref<256x128xf32, #tpu.memory_space<vmem>>, %arg3: memref<1x128xf32, #tpu.memory_space<vmem>>, %arg4: memref<128x128xf32, #tpu.memory_space<vmem>>, %arg5: memref<1x128xf32, #tpu.memory_space<vmem>>, %arg6: memref<64x128xf32, #tpu.memory_space<vmem>>, %arg7: memref<1x128xf32, #tpu.memory_space<vmem>>, %arg8: memref<128x128xf32, #tpu.memory_space<vmem>>, %arg9: memref<1x128xf32, #tpu.memory_space<vmem>>, %arg10: memref<24x128xf32, #tpu.memory_space<vmem>>, %arg11: memref<24x128xf32, #tpu.memory_space<vmem>>) attributes {dimension_semantics = [], scalar_prefetch = 0 : i64, scratch_operands = 0 : i64, tpu.core_type = #tpu.core_type<tc>} {
    %c0 = arith.constant 0 : index
    %c0_0 = arith.constant 0 : index
    %0 = vector.load %arg0[%c0, %c0_0] : memref<24x256xf32, #tpu.memory_space<vmem>>, vector<24x256xf32>
    %c0_1 = arith.constant 0 : index
    %c0_2 = arith.constant 0 : index
    %1 = vector.load %arg2[%c0_1, %c0_2] : memref<256x128xf32, #tpu.memory_space<vmem>>, vector<256x128xf32>
    %cst = arith.constant dense<0.000000e+00> : vector<24x128xf32>
    %2 = tpu.matmul %0, %1, %cst {dimension_numbers = #tpu.dot_dimension_numbers<[1], [0], [0], [1], [0, 0, 1, 1], [], []>} : vector<24x256xf32>, vector<256x128xf32>, vector<24x128xf32> -> vector<24x128xf32>
    %c0_3 = arith.constant 0 : index
    %c0_4 = arith.constant 0 : index
    %3 = vector.load %arg3[%c0_3, %c0_4] : memref<1x128xf32, #tpu.memory_space<vmem>>, vector<1x128xf32>
    %4 = vector.broadcast %3 : vector<1x128xf32> to vector<24x128xf32>
    %5 = arith.addf %2, %4 : vector<24x128xf32>
    %cst_5 = arith.constant 0.000000e+00 : f32
    %6 = vector.broadcast %cst_5 : f32 to vector<24x128xf32>
    %7 = arith.maximumf %5, %6 : vector<24x128xf32>
    %c0_6 = arith.constant 0 : index
    %c0_7 = arith.constant 0 : index
    %8 = vector.load %arg4[%c0_6, %c0_7] : memref<128x128xf32, #tpu.memory_space<vmem>>, vector<128x128xf32>
    %cst_8 = arith.constant dense<0.000000e+00> : vector<24x128xf32>
    %9 = tpu.matmul %7, %8, %cst_8 {dimension_numbers = #tpu.dot_dimension_numbers<[1], [0], [0], [1], [0, 0, 1, 1], [], []>} : vector<24x128xf32>, vector<128x128xf32>, vector<24x128xf32> -> vector<24x128xf32>
    %c0_9 = arith.constant 0 : index
    %c0_10 = arith.constant 0 : index
    %10 = vector.load %arg5[%c0_9, %c0_10] : memref<1x128xf32, #tpu.memory_space<vmem>>, vector<1x128xf32>
    %11 = vector.broadcast %10 : vector<1x128xf32> to vector<24x128xf32>
    %12 = arith.addf %9, %11 : vector<24x128xf32>
    %c0_11 = arith.constant 0 : index
    %c0_12 = arith.constant 0 : index
    %13 = vector.load %arg10[%c0_11, %c0_12] : memref<24x128xf32, #tpu.memory_space<vmem>>, vector<24x128xf32>
    tpu.vector_store %arg10[%c0_11, %c0_12], %12 {strides = array<i32>} : memref<24x128xf32, #tpu.memory_space<vmem>>, vector<24x128xf32>,
    %c0_13 = arith.constant 0 : index
    %c0_14 = arith.constant 0 : index
    %14 = vector.load %arg1[%c0_13, %c0_14] : memref<24x64xf32, #tpu.memory_space<vmem>>, vector<24x64xf32>
    %c0_15 = arith.constant 0 : index
    %c0_16 = arith.constant 0 : index
    %15 = vector.load %arg6[%c0_15, %c0_16] : memref<64x128xf32, #tpu.memory_space<vmem>>, vector<64x128xf32>
    %cst_17 = arith.constant dense<0.000000e+00> : vector<24x128xf32>
    %16 = tpu.matmul %14, %15, %cst_17 {dimension_numbers = #tpu.dot_dimension_numbers<[1], [0], [0], [1], [0, 0, 1, 1], [], []>} : vector<24x64xf32>, vector<64x128xf32>, vector<24x128xf32> -> vector<24x128xf32>
    %c0_18 = arith.constant 0 : index
    %c0_19 = arith.constant 0 : index
    %17 = vector.load %arg7[%c0_18, %c0_19] : memref<1x128xf32, #tpu.memory_space<vmem>>, vector<1x128xf32>
    %18 = vector.broadcast %17 : vector<1x128xf32> to vector<24x128xf32>
    %19 = arith.addf %16, %18 : vector<24x128xf32>
    %cst_20 = arith.constant 0.000000e+00 : f32
    %20 = vector.broadcast %cst_20 : f32 to vector<24x128xf32>
    %21 = arith.maximumf %19, %20 : vector<24x128xf32>
    %c0_21 = arith.constant 0 : index
    %c0_22 = arith.constant 0 : index
    %22 = vector.load %arg8[%c0_21, %c0_22] : memref<128x128xf32, #tpu.memory_space<vmem>>, vector<128x128xf32>
    %cst_23 = arith.constant dense<0.000000e+00> : vector<24x128xf32>
    %23 = tpu.matmul %21, %22, %cst_23 {dimension_numbers = #tpu.dot_dimension_numbers<[1], [0], [0], [1], [0, 0, 1, 1], [], []>} : vector<24x128xf32>, vector<128x128xf32>, vector<24x128xf32> -> vector<24x128xf32>
    %c0_24 = arith.constant 0 : index
    %c0_25 = arith.constant 0 : index
    %24 = vector.load %arg9[%c0_24, %c0_25] : memref<1x128xf32, #tpu.memory_space<vmem>>, vector<1x128xf32>
    %25 = vector.broadcast %24 : vector<1x128xf32> to vector<24x128xf32>
    %26 = arith.addf %23, %25 : vector<24x128xf32>
    %c0_26 = arith.constant 0 : index
    %c0_27 = arith.constant 0 : index
    %27 = vector.load %arg11[%c0_26, %c0_27] : memref<24x128xf32, #tpu.memory_space<vmem>>, vector<24x128xf32>
    tpu.vector_store %arg11[%c0_26, %c0_27], %26 {strides = array<i32>} : memref<24x128xf32, #tpu.memory_space<vmem>>, vector<24x128xf32>,
    return
  }
}

</mosaic_0001>

<llo_original>
// kernel: inter_triplet_net_forward.1
$region0: #{inter_triplet_net_forward.1}
  #allocation0 [shape = 'u32[]', space=smem, size = 0x4, offset = 0x4, fixed_abs, tag = 'smem constant byte address 0x4 - core index']
  #allocation1 [shape = 'u32[144,128]{1,0:T(1,128)}', space=vmem, size = 0x12000, scoped, tag = 'internal scratch']
  %s0 = inlined_call_operand.vmem [shape: f32[24,256], index: 0, kind: input, shape index: {}]
  %s1 = inlined_call_operand.vmem [shape: f32[24,64], index: 1, kind: input, shape index: {}]
  %s2 = inlined_call_operand.hbm [shape: f32[256,128], index: 2, kind: input, shape index: {}]
  %s3 = inlined_call_operand.vmem [shape: f32[1,128], index: 3, kind: input, shape index: {}]
  %s4 = inlined_call_operand.vmem [shape: f32[128,128], index: 4, kind: input, shape index: {}]
  %s5 = inlined_call_operand.vmem [shape: f32[1,128], index: 5, kind: input, shape index: {}]
  %s6 = inlined_call_operand.hbm [shape: f32[64,128], index: 6, kind: input, shape index: {}]
  %s7 = inlined_call_operand.hbm [shape: f32[1,128], index: 7, kind: input, shape index: {}]
  %s8 = inlined_call_operand.hbm [shape: f32[128,128], index: 8, kind: input, shape index: {}]
  %s9 = inlined_call_operand.hbm [shape: f32[1,128], index: 9, kind: input, shape index: {}]
  %s10 = inlined_call_operand.vmem [shape: f32[24,128], index: 10, kind: output, shape index: {0}]
  %s11 = inlined_call_operand.vmem [shape: f32[24,128], index: 11, kind: output, shape index: {1}]
  %12 = xla_tuple %s10, %s11
  %s13 = sld [smem:[#allocation0]]
  $region78: #{inter_triplet_net_forward.1} parent=0
    _
  %s15 = ssub.s32 1, %s13
  %s16 = scalar_select 0, %s15, %s13
  $region1: #{inter_triplet_net_forward.1} parent=0
    #allocation2 [shape = 'u8[131072]{0}', space=vmem, size = 0x20000, scoped, tag = 'input window, operand 2, single buffered']
    #allocation3 [shape = 's32[1]{0}', space=sflag, size = 0x4, scoped, tag = 'scoped memory for inter_triplet_net_forward.1']
    #allocation4 [shape = 'u8[32768]{0}', space=vmem, size = 0x8000, scoped, tag = 'input window, operand 6, single buffered']
    #allocation5 [shape = 's32[1]{0}', space=sflag, size = 0x4, scoped, tag = 'scoped memory for inter_triplet_net_forward.1']
    #allocation6 [shape = 'u8[512]{0}', space=vmem, size = 0x400, scoped, tag = 'input window, operand 7, single buffered']
    #allocation7 [shape = 'u8[65536]{0}', space=vmem, size = 0x10000, scoped, tag = 'input window, operand 8, single buffered']
    #allocation8 [shape = 's32[1]{0}', space=sflag, size = 0x4, scoped, tag = 'scoped memory for inter_triplet_net_forward.1']
    #allocation9 [shape = 'u8[512]{0}', space=vmem, size = 0x400, scoped, tag = 'input window, operand 9, single buffered']
    %17 = vsyncpa [#allocation3], 0
    %18 = vsyncpa [#allocation5], 0
    %19 = vsyncpa [#allocation8], 0
    // Predicated region
    $region2: #{inter_triplet_net_forward.1} parent=1 // pred_check
      _
    $region3: #{inter_triplet_net_forward.1} parent=1 // pred_check_branch
      %21 = sbr.rel (0) target = $region5
    $region4: #{inter_triplet_net_forward.1} parent=1 // pred_region
      _
    $region5: #{inter_triplet_net_forward.1} parent=1 // pred_fallthru
      _
    // Predicated region
    $region6: #{inter_triplet_net_forward.1} parent=1 // pred_check
      _
    $region7: #{inter_triplet_net_forward.1} parent=1 // pred_check_branch
      %23 = sbr.rel (0) target = $region9
    $region8: #{inter_triplet_net_forward.1} parent=1 // pred_region
      _
    $region9: #{inter_triplet_net_forward.1} parent=1 // pred_fallthru
      _
    // Predicated region
    $region10: #{inter_triplet_net_forward.1} parent=1 // pred_check
      _
    $region11: #{inter_triplet_net_forward.1} parent=1 // pred_check_branch
      %25 = sbr.rel (0) target = $region13
    $region12: #{inter_triplet_net_forward.1} parent=1 // pred_region
      %s27 = ssub.s32 4096, 4096
      %28 = vsyncadd [#allocation3], %s27
      %s29 = sshll.u32 [#allocation2], 4
      %s30 = int_to_ptr.vmem [resolvable:$true] %s29
      %35 = dma.hbm_to_vmem [thread:$0]  %s2, 4096, %s30, [#allocation3], 128, 128, 8
    $region13: #{inter_triplet_net_forward.1} parent=1 // pred_fallthru
      _
    // Predicated region
    $region14: #{inter_triplet_net_forward.1} parent=1 // pred_check
      _
    $region15: #{inter_triplet_net_forward.1} parent=1 // pred_check_branch
      %37 = sbr.rel (0) target = $region17
    $region16: #{inter_triplet_net_forward.1} parent=1 // pred_region
      _
    $region17: #{inter_triplet_net_forward.1} parent=1 // pred_fallthru
      _
    // Predicated region
    $region18: #{inter_triplet_net_forward.1} parent=1 // pred_check
      _
    $region19: #{inter_triplet_net_forward.1} parent=1 // pred_check_branch
      %39 = sbr.rel (0) target = $region21
    $region20: #{inter_triplet_net_forward.1} parent=1 // pred_region
      _
    $region21: #{inter_triplet_net_forward.1} parent=1 // pred_fallthru
      _
    // Predicated region
    $region22: #{inter_triplet_net_forward.1} parent=1 // pred_check
      _
    $region23: #{inter_triplet_net_forward.1} parent=1 // pred_check_branch
      %41 = sbr.rel (0) target = $region25
    $region24: #{inter_triplet_net_forward.1} parent=1 // pred_region
      _
    $region25: #{inter_triplet_net_forward.1} parent=1 // pred_fallthru
      _
    // Predicated region
    $region26: #{inter_triplet_net_forward.1} parent=1 // pred_check
      _
    $region27: #{inter_triplet_net_forward.1} parent=1 // pred_check_branch
      %43 = sbr.rel (0) target = $region29
    $region28: #{inter_triplet_net_forward.1} parent=1 // pred_region
      %s45 = ssub.s32 1024, 1024
      %46 = vsyncadd [#allocation5], %s45
      %s47 = sshll.u32 [#allocation4], 4
      %s48 = int_to_ptr.vmem [resolvable:$true] %s47
      %53 = dma.hbm_to_vmem [thread:$0]  %s6, 1024, %s48, [#allocation5], 128, 128, 8
    $region29: #{inter_triplet_net_forward.1} parent=1 // pred_fallthru
      _
    // Predicated region
    $region30: #{inter_triplet_net_forward.1} parent=1 // pred_check
      _
    $region31: #{inter_triplet_net_forward.1} parent=1 // pred_check_branch
      %55 = sbr.rel (0) target = $region33
    $region32: #{inter_triplet_net_forward.1} parent=1 // pred_region
      %s57 = ssub.s32 16, 16
      %58 = vsyncadd [#allocation5], %s57
      %s60 = sshll.u32 [#allocation6], 4
      %s61 = int_to_ptr.vmem [resolvable:$true] %s60
      %63 = dma.hbm_to_vmem [thread:$0]  %s7, 16, %s61, [#allocation5]
    $region33: #{inter_triplet_net_forward.1} parent=1 // pred_fallthru
      _
    // Predicated region
    $region34: #{inter_triplet_net_forward.1} parent=1 // pred_check
      _
    $region35: #{inter_triplet_net_forward.1} parent=1 // pred_check_branch
      %65 = sbr.rel (0) target = $region37
    $region36: #{inter_triplet_net_forward.1} parent=1 // pred_region
      %s67 = ssub.s32 2048, 2048
      %68 = vsyncadd [#allocation8], %s67
      %s69 = sshll.u32 [#allocation7], 4
      %s70 = int_to_ptr.vmem [resolvable:$true] %s69
      %75 = dma.hbm_to_vmem [thread:$0]  %s8, 2048, %s70, [#allocation8], 128, 128, 8
    $region37: #{inter_triplet_net_forward.1} parent=1 // pred_fallthru
      _
    // Predicated region
    $region38: #{inter_triplet_net_forward.1} parent=1 // pred_check
      _
    $region39: #{inter_triplet_net_forward.1} parent=1 // pred_check_branch
      %77 = sbr.rel (0) target = $region41
    $region40: #{inter_triplet_net_forward.1} parent=1 // pred_region
      %s79 = ssub.s32 16, 16
      %80 = vsyncadd [#allocation8], %s79
      %s82 = sshll.u32 [#allocation9], 4
      %s83 = int_to_ptr.vmem [resolvable:$true] %s82
      %85 = dma.hbm_to_vmem [thread:$0]  %s9, 16, %s83, [#allocation8]
    $region41: #{inter_triplet_net_forward.1} parent=1 // pred_fallthru
      _
    // Predicated region
    $region42: #{inter_triplet_net_forward.1} parent=1 // pred_check
      _
    $region43: #{inter_triplet_net_forward.1} parent=1 // pred_check_branch
      %87 = sbr.rel (0) target = $region45
    $region44: #{inter_triplet_net_forward.1} parent=1 // pred_region
      %88 = dma.done [#allocation3], 4096
    $region45: #{inter_triplet_net_forward.1} parent=1 // pred_fallthru
      _
    // Predicated region
    $region46: #{inter_triplet_net_forward.1} parent=1 // pred_check
      _
    $region47: #{inter_triplet_net_forward.1} parent=1 // pred_check_branch
      %90 = sbr.rel (0) target = $region49
    $region48: #{inter_triplet_net_forward.1} parent=1 // pred_region
      %91 = dma.done [#allocation5], 1024
    $region49: #{inter_triplet_net_forward.1} parent=1 // pred_fallthru
      _
    // Predicated region
    $region50: #{inter_triplet_net_forward.1} parent=1 // pred_check
      _
    $region51: #{inter_triplet_net_forward.1} parent=1 // pred_check_branch
      %93 = sbr.rel (0) target = $region53
    $region52: #{inter_triplet_net_forward.1} parent=1 // pred_region
      %94 = dma.done [#allocation5], 16
    $region53: #{inter_triplet_net_forward.1} parent=1 // pred_fallthru
      _
    // Predicated region
    $region54: #{inter_triplet_net_forward.1} parent=1 // pred_check
      _
    $region55: #{inter_triplet_net_forward.1} parent=1 // pred_check_branch
      %96 = sbr.rel (0) target = $region57
    $region56: #{inter_triplet_net_forward.1} parent=1 // pred_region
      %97 = dma.done [#allocation8], 2048
    $region57: #{inter_triplet_net_forward.1} parent=1 // pred_fallthru
      _
    // Predicated region
    $region58: #{inter_triplet_net_forward.1} parent=1 // pred_check
      _
    $region59: #{inter_triplet_net_forward.1} parent=1 // pred_check_branch
      %99 = sbr.rel (0) target = $region61
    $region60: #{inter_triplet_net_forward.1} parent=1 // pred_region
      %100 = dma.done [#allocation8], 16
    $region61: #{inter_triplet_net_forward.1} parent=1 // pred_fallthru
      _
    %v101 = vld [vmem:[%s0] sm:$0xff]
    %v102 = vld [vmem:[%s0 + $0x8] sm:$0xff]
    %v103 = vld [vmem:[%s0 + $0x10] sm:$0xff]
    %v104 = vld [vmem:[%s0 + $0x18] sm:$0xff]
    %v105 = vld [vmem:[%s0 + $0x20] sm:$0xff]
    %v106 = vld [vmem:[%s0 + $0x28] sm:$0xff]
    %v107 = vld [vmem:[#allocation2] sm:$0xff]
    %v108 = vld [vmem:[#allocation2 + $0x8] sm:$0xff]
    %v109 = vld [vmem:[#allocation2 + $0x10] sm:$0xff]
    %v110 = vld [vmem:[#allocation2 + $0x18] sm:$0xff]
    %v111 = vld [vmem:[#allocation2 + $0x20] sm:$0xff]
    %v112 = vld [vmem:[#allocation2 + $0x28] sm:$0xff]
    %v113 = vld [vmem:[#allocation2 + $0x30] sm:$0xff]
    %v114 = vld [vmem:[#allocation2 + $0x38] sm:$0xff]
    %v115 = vld [vmem:[#allocation2 + $0x40] sm:$0xff]
    %v116 = vld [vmem:[#allocation2 + $0x48] sm:$0xff]
    %v117 = vld [vmem:[#allocation2 + $0x50] sm:$0xff]
    %v118 = vld [vmem:[#allocation2 + $0x58] sm:$0xff]
    %v119 = vld [vmem:[#allocation2 + $0x60] sm:$0xff]
    %v120 = vld [vmem:[#allocation2 + $0x68] sm:$0xff]
    %v121 = vld [vmem:[#allocation2 + $0x70] sm:$0xff]
    %v122 = vld [vmem:[#allocation2 + $0x78] sm:$0xff]
    %v123 = vld [vmem:[#allocation2 + $0x80] sm:$0xff]
    %v124 = vld [vmem:[#allocation2 + $0x88] sm:$0xff]
    %v125 = vld [vmem:[#allocation2 + $0x90] sm:$0xff]
    %v126 = vld [vmem:[#allocation2 + $0x98] sm:$0xff]
    %v127 = vld [vmem:[#allocation2 + $0xa0] sm:$0xff]
    %v128 = vld [vmem:[#allocation2 + $0xa8] sm:$0xff]
    %v129 = vld [vmem:[#allocation2 + $0xb0] sm:$0xff]
    %v130 = vld [vmem:[#allocation2 + $0xb8] sm:$0xff]
    %v131 = vld [vmem:[#allocation2 + $0xc0] sm:$0xff]
    %v132 = vld [vmem:[#allocation2 + $0xc8] sm:$0xff]
    %v133 = vld [vmem:[#allocation2 + $0xd0] sm:$0xff]
    %v134 = vld [vmem:[#allocation2 + $0xd8] sm:$0xff]
    %v135 = vld [vmem:[#allocation2 + $0xe0] sm:$0xff]
    %v136 = vld [vmem:[#allocation2 + $0xe8] sm:$0xff]
    %v137 = vld [vmem:[#allocation2 + $0xf0] sm:$0xff]
    %v138 = vld [vmem:[#allocation2 + $0xf8] sm:$0xff]
    %v139 = vld [vmem:[%s3] sm:$0x1]
    %v141 = vlaneseq
    %v142 = vshrl.u32 %v141, 7
    %v143 = vsub.s32 0, %v142
    %v144 = vrot.slane %v139, %v143
    %146 = vmatprep.subr.mxu0 0.0
    %147 = vmatpush1.msra.mxu0 %v107
    %148 = vmatprep.subr.mxu0 0.0
    %149 = vmatpush1.msra.mxu0 %v108
    %150 = vmatprep.subr.mxu0 0.0
    %151 = vmatpush1.msra.mxu0 %v109
    %152 = vmatprep.subr.mxu0 0.0
    %153 = vmatpush1.msra.mxu0 %v110
    %154 = vmatprep.subr.mxu0 0.0
    %155 = vmatpush1.msra.mxu0 %v111
    %156 = vmatprep.subr.mxu0 0.0
    %157 = vmatpush1.msra.mxu0 %v112
    %158 = vmatprep.subr.mxu0 0.0
    %159 = vmatpush1.msra.mxu0 %v113
    %160 = vmatprep.subr.mxu0 0.0
    %161 = vmatpush1.msra.mxu0 %v114
    %162 = vmatprep.subr.mxu0 0.0
    %163 = vmatpush1.msra.mxu0 %v115
    %164 = vmatprep.subr.mxu0 0.0
    %165 = vmatpush1.msra.mxu0 %v116
    %166 = vmatprep.subr.mxu0 0.0
    %167 = vmatpush1.msra.mxu0 %v117
    %168 = vmatprep.subr.mxu0 0.0
    %169 = vmatpush1.msra.mxu0 %v118
    %170 = vmatprep.subr.mxu0 0.0
    %171 = vmatpush1.msra.mxu0 %v119
    %172 = vmatprep.subr.mxu0 0.0
    %173 = vmatpush1.msra.mxu0 %v120
    %174 = vmatprep.subr.mxu0 0.0
    %175 = vmatpush1.msra.mxu0 %v121
    %176 = vmatprep.subr.mxu0 0.0
    %177 = vmatpush1.msra.mxu0 %v122
    %178 = vmatprep.subr.mxu0 0.0
    %179 = vmatpush1.msra.mxu0 %v123
    %180 = vmatprep.subr.mxu0 0.0
    %181 = vmatpush1.msra.mxu0 %v124
    %182 = vmatprep.subr.mxu0 0.0
    %183 = vmatpush1.msra.mxu0 %v125
    %184 = vmatprep.subr.mxu0 0.0
    %185 = vmatpush1.msra.mxu0 %v126
    %186 = vmatprep.subr.mxu0 0.0
    %187 = vmatpush1.msra.mxu0 %v127
    %188 = vmatprep.subr.mxu0 0.0
    %189 = vmatpush1.msra.mxu0 %v128
    %190 = vmatprep.subr.mxu0 0.0
    %191 = vmatpush1.msra.mxu0 %v129
    %192 = vmatprep.subr.mxu0 0.0
    %193 = vmatpush1.msra.mxu0 %v130
    %194 = vmatprep.subr.mxu0 0.0
    %195 = vmatpush1.msra.mxu0 %v131
    %196 = vmatprep.subr.mxu0 0.0
    %197 = vmatpush1.msra.mxu0 %v132
    %198 = vmatprep.subr.mxu0 0.0
    %199 = vmatpush1.msra.mxu0 %v133
    %200 = vmatprep.subr.mxu0 0.0
    %201 = vmatpush1.msra.mxu0 %v134
    %202 = vmatprep.subr.mxu0 0.0
    %203 = vmatpush1.msra.mxu0 %v135
    %204 = vmatprep.subr.mxu0 0.0
    %205 = vmatpush1.msra.mxu0 %v136
    %206 = vmatprep.subr.mxu0 0.0
    %207 = vmatpush1.msra.mxu0 %v137
    %208 = vmatprep.subr.mxu0 0.0
    %209 = vmatpush1.msra.mxu0 %v138
    %210 = vmatprep.mubr.f32.mxu0 %v102
    %211 = vmatmul.mubr.f32.gmra.mrb[0].mxu0 %v101
    %v212 = vpop.f32.mrb[0].mxu0
    %v213 = vadd.f32 %v144, %v212
    %v214 = vpop.f32.mrb[0].mxu0
    %215 = vmatprep.mubr.f32.mxu0 %v104
    %216 = vmatmul.mubr.f32.gmra.mrb[0].mxu0 %v103
    %v217 = vpop.f32.mrb[0].mxu0
    %v218 = vadd.f32 %v144, %v217
    %v219 = vpop.f32.mrb[0].mxu0
    %220 = vmatprep.mubr.f32.mxu0 %v106
    %221 = vmatmul.mubr.f32.gmra.mrb[0].mxu0 %v105
    %v222 = vpop.f32.mrb[0].mxu0
    %v223 = vadd.f32 %v144, %v222
    %v224 = vpop.f32.mrb[0].mxu0
    %225 = vdwg.mxu0
    %v226 = vmax.f32 %v213, 0.0
    %v227 = vmax.f32 %v218, 0.0
    %v228 = vmax.f32 %v223, 0.0
    %v229 = vld [vmem:[%s4] sm:$0xff]
    %v230 = vld [vmem:[%s4 + $0x8] sm:$0xff]
    %v231 = vld [vmem:[%s4 + $0x10] sm:$0xff]
    %v232 = vld [vmem:[%s4 + $0x18] sm:$0xff]
    %v233 = vld [vmem:[%s4 + $0x20] sm:$0xff]
    %v234 = vld [vmem:[%s4 + $0x28] sm:$0xff]
    %v235 = vld [vmem:[%s4 + $0x30] sm:$0xff]
    %v236 = vld [vmem:[%s4 + $0x38] sm:$0xff]
    %v237 = vld [vmem:[%s4 + $0x40] sm:$0xff]
    %v238 = vld [vmem:[%s4 + $0x48] sm:$0xff]
    %v239 = vld [vmem:[%s4 + $0x50] sm:$0xff]
    %v240 = vld [vmem:[%s4 + $0x58] sm:$0xff]
    %v241 = vld [vmem:[%s4 + $0x60] sm:$0xff]
    %v242 = vld [vmem:[%s4 + $0x68] sm:$0xff]
    %v243 = vld [vmem:[%s4 + $0x70] sm:$0xff]
    %v244 = vld [vmem:[%s4 + $0x78] sm:$0xff]
    %v245 = vld [vmem:[%s5] sm:$0x1]
    %v247 = vlaneseq
    %v248 = vshrl.u32 %v247, 7
    %v249 = vsub.s32 0, %v248
    %v250 = vrot.slane %v245, %v249
    %252 = vmatprep.subr.mxu0 0.0
    %253 = vmatpush1.msra.mxu0 %v229
    %254 = vmatprep.subr.mxu0 0.0
    %255 = vmatpush1.msra.mxu0 %v230
    %256 = vmatprep.subr.mxu0 0.0
    %257 = vmatpush1.msra.mxu0 %v231
    %258 = vmatprep.subr.mxu0 0.0
    %259 = vmatpush1.msra.mxu0 %v232
    %260 = vmatprep.subr.mxu0 0.0
    %261 = vmatpush1.msra.mxu0 %v233
    %262 = vmatprep.subr.mxu0 0.0
    %263 = vmatpush1.msra.mxu0 %v234
    %264 = vmatprep.subr.mxu0 0.0
    %265 = vmatpush1.msra.mxu0 %v235
    %266 = vmatprep.subr.mxu0 0.0
    %267 = vmatpush1.msra.mxu0 %v236
    %268 = vmatprep.subr.mxu0 0.0
    %269 = vmatpush1.msra.mxu0 %v237
    %270 = vmatprep.subr.mxu0 0.0
    %271 = vmatpush1.msra.mxu0 %v238
    %272 = vmatprep.subr.mxu0 0.0
    %273 = vmatpush1.msra.mxu0 %v239
    %274 = vmatprep.subr.mxu0 0.0
    %275 = vmatpush1.msra.mxu0 %v240
    %276 = vmatprep.subr.mxu0 0.0
    %277 = vmatpush1.msra.mxu0 %v241
    %278 = vmatprep.subr.mxu0 0.0
    %279 = vmatpush1.msra.mxu0 %v242
    %280 = vmatprep.subr.mxu0 0.0
    %281 = vmatpush1.msra.mxu0 %v243
    %282 = vmatprep.subr.mxu0 0.0
    %283 = vmatpush1.msra.mxu0 %v244
    %284 = vmatprep.subr.mxu0 0.0
    %285 = vmatpush1.msra.mxu0 0.0
    %286 = vmatprep.subr.mxu0 0.0
    %287 = vmatpush1.msra.mxu0 0.0
    %288 = vmatprep.subr.mxu0 0.0
    %289 = vmatpush1.msra.mxu0 0.0
    %290 = vmatprep.subr.mxu0 0.0
    %291 = vmatpush1.msra.mxu0 0.0
    %292 = vmatprep.subr.mxu0 0.0
    %293 = vmatpush1.msra.mxu0 0.0
    %294 = vmatprep.subr.mxu0 0.0
    %295 = vmatpush1.msra.mxu0 0.0
    %296 = vmatprep.subr.mxu0 0.0
    %297 = vmatpush1.msra.mxu0 0.0
    %298 = vmatprep.subr.mxu0 0.0
    %299 = vmatpush1.msra.mxu0 0.0
    %300 = vmatprep.subr.mxu0 0.0
    %301 = vmatpush1.msra.mxu0 0.0
    %302 = vmatprep.subr.mxu0 0.0
    %303 = vmatpush1.msra.mxu0 0.0
    %304 = vmatprep.subr.mxu0 0.0
    %305 = vmatpush1.msra.mxu0 0.0
    %306 = vmatprep.subr.mxu0 0.0
    %307 = vmatpush1.msra.mxu0 0.0
    %308 = vmatprep.subr.mxu0 0.0
    %309 = vmatpush1.msra.mxu0 0.0
    %310 = vmatprep.subr.mxu0 0.0
    %311 = vmatpush1.msra.mxu0 0.0
    %312 = vmatprep.subr.mxu0 0.0
    %313 = vmatpush1.msra.mxu0 0.0
    %314 = vmatprep.subr.mxu0 0.0
    %315 = vmatpush1.msra.mxu0 0.0
    %316 = vmatprep.mubr.f32.mxu0 0.0
    %317 = vmatmul.mubr.f32.gmra.mrb[0].mxu0 %v226
    %v318 = vpop.f32.mrb[0].mxu0
    %v319 = vadd.f32 %v250, %v318
    %v320 = vpop.f32.mrb[0].mxu0
    %321 = vmatprep.mubr.f32.mxu0 0.0
    %322 = vmatmul.mubr.f32.gmra.mrb[0].mxu0 %v227
    %v323 = vpop.f32.mrb[0].mxu0
    %v324 = vadd.f32 %v250, %v323
    %v325 = vpop.f32.mrb[0].mxu0
    %326 = vmatprep.mubr.f32.mxu0 0.0
    %327 = vmatmul.mubr.f32.gmra.mrb[0].mxu0 %v228
    %v328 = vpop.f32.mrb[0].mxu0
    %v329 = vadd.f32 %v250, %v328
    %v330 = vpop.f32.mrb[0].mxu0
    %331 = vdwg.mxu0
    %332 = vst [vmem:[%s10] sm:$0xff] %v319
    %333 = vst [vmem:[%s10 + $0x8] sm:$0xff] %v324
    %334 = vst [vmem:[%s10 + $0x10] sm:$0xff] %v329
    %v335 = vld [vmem:[%s1] sm:$0xff]
    %v336 = vld [vmem:[%s1 + $0x8] sm:$0xff]
    %v337 = vld [vmem:[%s1 + $0x10] sm:$0xff]
    %v338 = vld [vmem:[#allocation4] sm:$0xff]
    %v339 = vld [vmem:[#allocation4 + $0x8] sm:$0xff]
    %v340 = vld [vmem:[#allocation4 + $0x10] sm:$0xff]
    %v341 = vld [vmem:[#allocation4 + $0x18] sm:$0xff]
    %v342 = vld [vmem:[#allocation4 + $0x20] sm:$0xff]
    %v343 = vld [vmem:[#allocation4 + $0x28] sm:$0xff]
    %v344 = vld [vmem:[#allocation4 + $0x30] sm:$0xff]
    %v345 = vld [vmem:[#allocation4 + $0x38] sm:$0xff]
    %v346 = vld [vmem:[#allocation6] sm:$0x1]
    %v348 = vlaneseq
    %v349 = vshrl.u32 %v348, 7
    %v350 = vsub.s32 0, %v349
    %v351 = vrot.slane %v346, %v350
    %vm353 = vcmask 523264
    %v355 = vsel %vm353, %v335, 0
    %v358 = vsel %vm353, %v336, 0
    %v361 = vsel %vm353, %v337, 0
    %363 = vmatprep.subr.mxu0 0.0
    %364 = vmatpush1.msra.mxu0 %v338
    %365 = vmatprep.subr.mxu0 0.0
    %366 = vmatpush1.msra.mxu0 %v339
    %367 = vmatprep.subr.mxu0 0.0
    %368 = vmatpush1.msra.mxu0 %v340
    %369 = vmatprep.subr.mxu0 0.0
    %370 = vmatpush1.msra.mxu0 %v341
    %371 = vmatprep.subr.mxu0 0.0
    %372 = vmatpush1.msra.mxu0 %v342
    %373 = vmatprep.subr.mxu0 0.0
    %374 = vmatpush1.msra.mxu0 %v343
    %375 = vmatprep.subr.mxu0 0.0
    %376 = vmatpush1.msra.mxu0 %v344
    %377 = vmatprep.subr.mxu0 0.0
    %378 = vmatpush1.msra.mxu0 %v345
    %379 = vmatprep.subr.mxu0 0.0
    %380 = vmatpush1.msra.mxu0 0.0
    %381 = vmatprep.subr.mxu0 0.0
    %382 = vmatpush1.msra.mxu0 0.0
    %383 = vmatprep.subr.mxu0 0.0
    %384 = vmatpush1.msra.mxu0 0.0
    %385 = vmatprep.subr.mxu0 0.0
    %386 = vmatpush1.msra.mxu0 0.0
    %387 = vmatprep.subr.mxu0 0.0
    %388 = vmatpush1.msra.mxu0 0.0
    %389 = vmatprep.subr.mxu0 0.0
    %390 = vmatpush1.msra.mxu0 0.0
    %391 = vmatprep.subr.mxu0 0.0
    %392 = vmatpush1.msra.mxu0 0.0
    %393 = vmatprep.subr.mxu0 0.0
    %394 = vmatpush1.msra.mxu0 0.0
    %395 = vmatprep.subr.mxu0 0.0
    %396 = vmatpush1.msra.mxu0 0.0
    %397 = vmatprep.subr.mxu0 0.0
    %398 = vmatpush1.msra.mxu0 0.0
    %399 = vmatprep.subr.mxu0 0.0
    %400 = vmatpush1.msra.mxu0 0.0
    %401 = vmatprep.subr.mxu0 0.0
    %402 = vmatpush1.msra.mxu0 0.0
    %403 = vmatprep.subr.mxu0 0.0
    %404 = vmatpush1.msra.mxu0 0.0
    %405 = vmatprep.subr.mxu0 0.0
    %406 = vmatpush1.msra.mxu0 0.0
    %407 = vmatprep.subr.mxu0 0.0
    %408 = vmatpush1.msra.mxu0 0.0
    %409 = vmatprep.subr.mxu0 0.0
    %410 = vmatpush1.msra.mxu0 0.0
    %411 = vmatprep.subr.mxu0 0.0
    %412 = vmatpush1.msra.mxu0 0.0
    %413 = vmatprep.subr.mxu0 0.0
    %414 = vmatpush1.msra.mxu0 0.0
    %415 = vmatprep.subr.mxu0 0.0
    %416 = vmatpush1.msra.mxu0 0.0
    %417 = vmatprep.subr.mxu0 0.0
    %418 = vmatpush1.msra.mxu0 0.0
    %419 = vmatprep.subr.mxu0 0.0
    %420 = vmatpush1.msra.mxu0 0.0
    %421 = vmatprep.subr.mxu0 0.0
    %422 = vmatpush1.msra.mxu0 0.0
    %423 = vmatprep.subr.mxu0 0.0
    %424 = vmatpush1.msra.mxu0 0.0
    %425 = vmatprep.subr.mxu0 0.0
    %426 = vmatpush1.msra.mxu0 0.0
    %427 = vmatprep.mubr.f32.mxu0 0.0
    %428 = vmatmul.mubr.f32.gmra.mrb[0].mxu0 %v355
    %v429 = vpop.f32.mrb[0].mxu0
    %v430 = vadd.f32 %v351, %v429
    %v431 = vpop.f32.mrb[0].mxu0
    %432 = vmatprep.mubr.f32.mxu0 0.0
    %433 = vmatmul.mubr.f32.gmra.mrb[0].mxu0 %v358
    %v434 = vpop.f32.mrb[0].mxu0
    %v435 = vadd.f32 %v351, %v434
    %v436 = vpop.f32.mrb[0].mxu0
    %437 = vmatprep.mubr.f32.mxu0 0.0
    %438 = vmatmul.mubr.f32.gmra.mrb[0].mxu0 %v361
    %v439 = vpop.f32.mrb[0].mxu0
    %v440 = vadd.f32 %v351, %v439
    %v441 = vpop.f32.mrb[0].mxu0
    %442 = vdwg.mxu0
    %v443 = vmax.f32 %v430, 0.0
    %v444 = vmax.f32 %v435, 0.0
    %v445 = vmax.f32 %v440, 0.0
    %v446 = vld [vmem:[#allocation7] sm:$0xff]
    %v447 = vld [vmem:[#allocation7 + $0x8] sm:$0xff]
    %v448 = vld [vmem:[#allocation7 + $0x10] sm:$0xff]
    %v449 = vld [vmem:[#allocation7 + $0x18] sm:$0xff]
    %v450 = vld [vmem:[#allocation7 + $0x20] sm:$0xff]
    %v451 = vld [vmem:[#allocation7 + $0x28] sm:$0xff]
    %v452 = vld [vmem:[#allocation7 + $0x30] sm:$0xff]
    %v453 = vld [vmem:[#allocation7 + $0x38] sm:$0xff]
    %v454 = vld [vmem:[#allocation7 + $0x40] sm:$0xff]
    %v455 = vld [vmem:[#allocation7 + $0x48] sm:$0xff]
    %v456 = vld [vmem:[#allocation7 + $0x50] sm:$0xff]
    %v457 = vld [vmem:[#allocation7 + $0x58] sm:$0xff]
    %v458 = vld [vmem:[#allocation7 + $0x60] sm:$0xff]
    %v459 = vld [vmem:[#allocation7 + $0x68] sm:$0xff]
    %v460 = vld [vmem:[#allocation7 + $0x70] sm:$0xff]
    %v461 = vld [vmem:[#allocation7 + $0x78] sm:$0xff]
    %v462 = vld [vmem:[#allocation9] sm:$0x1]
    %v464 = vlaneseq
    %v465 = vshrl.u32 %v464, 7
    %v466 = vsub.s32 0, %v465
    %v467 = vrot.slane %v462, %v466
    %469 = vmatprep.subr.mxu0 0.0
    %470 = vmatpush1.msra.mxu0 %v446
    %471 = vmatprep.subr.mxu0 0.0
    %472 = vmatpush1.msra.mxu0 %v447
    %473 = vmatprep.subr.mxu0 0.0
    %474 = vmatpush1.msra.mxu0 %v448
    %475 = vmatprep.subr.mxu0 0.0
    %476 = vmatpush1.msra.mxu0 %v449
    %477 = vmatprep.subr.mxu0 0.0
    %478 = vmatpush1.msra.mxu0 %v450
    %479 = vmatprep.subr.mxu0 0.0
    %480 = vmatpush1.msra.mxu0 %v451
    %481 = vmatprep.subr.mxu0 0.0
    %482 = vmatpush1.msra.mxu0 %v452
    %483 = vmatprep.subr.mxu0 0.0
    %484 = vmatpush1.msra.mxu0 %v453
    %485 = vmatprep.subr.mxu0 0.0
    %486 = vmatpush1.msra.mxu0 %v454
    %487 = vmatprep.subr.mxu0 0.0
    %488 = vmatpush1.msra.mxu0 %v455
    %489 = vmatprep.subr.mxu0 0.0
    %490 = vmatpush1.msra.mxu0 %v456
    %491 = vmatprep.subr.mxu0 0.0
    %492 = vmatpush1.msra.mxu0 %v457
    %493 = vmatprep.subr.mxu0 0.0
    %494 = vmatpush1.msra.mxu0 %v458
    %495 = vmatprep.subr.mxu0 0.0
    %496 = vmatpush1.msra.mxu0 %v459
    %497 = vmatprep.subr.mxu0 0.0
    %498 = vmatpush1.msra.mxu0 %v460
    %499 = vmatprep.subr.mxu0 0.0
    %500 = vmatpush1.msra.mxu0 %v461
    %501 = vmatprep.subr.mxu0 0.0
    %502 = vmatpush1.msra.mxu0 0.0
    %503 = vmatprep.subr.mxu0 0.0
    %504 = vmatpush1.msra.mxu0 0.0
    %505 = vmatprep.subr.mxu0 0.0
    %506 = vmatpush1.msra.mxu0 0.0
    %507 = vmatprep.subr.mxu0 0.0
    %508 = vmatpush1.msra.mxu0 0.0
    %509 = vmatprep.subr.mxu0 0.0
    %510 = vmatpush1.msra.mxu0 0.0
    %511 = vmatprep.subr.mxu0 0.0
    %512 = vmatpush1.msra.mxu0 0.0
    %513 = vmatprep.subr.mxu0 0.0
    %514 = vmatpush1.msra.mxu0 0.0
    %515 = vmatprep.subr.mxu0 0.0
    %516 = vmatpush1.msra.mxu0 0.0
    %517 = vmatprep.subr.mxu0 0.0
    %518 = vmatpush1.msra.mxu0 0.0
    %519 = vmatprep.subr.mxu0 0.0
    %520 = vmatpush1.msra.mxu0 0.0
    %521 = vmatprep.subr.mxu0 0.0
    %522 = vmatpush1.msra.mxu0 0.0
    %523 = vmatprep.subr.mxu0 0.0
    %524 = vmatpush1.msra.mxu0 0.0
    %525 = vmatprep.subr.mxu0 0.0
    %526 = vmatpush1.msra.mxu0 0.0
    %527 = vmatprep.subr.mxu0 0.0
    %528 = vmatpush1.msra.mxu0 0.0
    %529 = vmatprep.subr.mxu0 0.0
    %530 = vmatpush1.msra.mxu0 0.0
    %531 = vmatprep.subr.mxu0 0.0
    %532 = vmatpush1.msra.mxu0 0.0
    %533 = vmatprep.mubr.f32.mxu0 0.0
    %534 = vmatmul.mubr.f32.gmra.mrb[0].mxu0 %v443
    %v535 = vpop.f32.mrb[0].mxu0
    %v536 = vadd.f32 %v467, %v535
    %v537 = vpop.f32.mrb[0].mxu0
    %538 = vmatprep.mubr.f32.mxu0 0.0
    %539 = vmatmul.mubr.f32.gmra.mrb[0].mxu0 %v444
    %v540 = vpop.f32.mrb[0].mxu0
    %v541 = vadd.f32 %v467, %v540
    %v542 = vpop.f32.mrb[0].mxu0
    %543 = vmatprep.mubr.f32.mxu0 0.0
    %544 = vmatmul.mubr.f32.gmra.mrb[0].mxu0 %v445
    %v545 = vpop.f32.mrb[0].mxu0
    %v546 = vadd.f32 %v467, %v545
    %v547 = vpop.f32.mrb[0].mxu0
    %548 = vdwg.mxu0
    %549 = vst [vmem:[%s11] sm:$0xff] %v536
    %550 = vst [vmem:[%s11 + $0x8] sm:$0xff] %v541
    %551 = vst [vmem:[%s11 + $0x10] sm:$0xff] %v546
    // Predicated region
    $region62: #{inter_triplet_net_forward.1} parent=1 // pred_check
      _
    $region63: #{inter_triplet_net_forward.1} parent=1 // pred_check_branch
      %553 = sbr.rel (0) target = $region65
    $region64: #{inter_triplet_net_forward.1} parent=1 // pred_region
      _
    $region65: #{inter_triplet_net_forward.1} parent=1 // pred_fallthru
      _
    // Predicated region
    $region66: #{inter_triplet_net_forward.1} parent=1 // pred_check
      _
    $region67: #{inter_triplet_net_forward.1} parent=1 // pred_check_branch
      %555 = sbr.rel (0) target = $region69
    $region68: #{inter_triplet_net_forward.1} parent=1 // pred_region
      _
    $region69: #{inter_triplet_net_forward.1} parent=1 // pred_fallthru
      _
    // Predicated region
    $region70: #{inter_triplet_net_forward.1} parent=1 // pred_check
      _
    $region71: #{inter_triplet_net_forward.1} parent=1 // pred_check_branch
      %557 = sbr.rel (0) target = $region73
    $region72: #{inter_triplet_net_forward.1} parent=1 // pred_region
      _
    $region73: #{inter_triplet_net_forward.1} parent=1 // pred_fallthru
      _
    // Predicated region
    $region74: #{inter_triplet_net_forward.1} parent=1 // pred_check
      _
    $region75: #{inter_triplet_net_forward.1} parent=1 // pred_check_branch
      %559 = sbr.rel (0) target = $region77
    $region76: #{inter_triplet_net_forward.1} parent=1 // pred_region
      _
    $region77: #{inter_triplet_net_forward.1} parent=1 // pred_fallthru
      _
    %560 = vsyncpa [#allocation3], 1
    %561 = vsyncpa [#allocation5], 1
    %562 = vsyncpa [#allocation8], 1

</llo_original>
